<compile_context>
chip_gen: v5e
topology: v5e:2x2
jax: 0.10.0
libtpu: 0.0.40
codegen_flags: <defaults>
</compile_context>

<pallas_src>
import functools

import jax
import jax.numpy as jnp
from jax import lax
from jax.experimental import pallas as pl
from jax.experimental.pallas import tpu as pltpu

_LANE = 128
_TINY_BYTES = 256 * 1024          # below this, skip Pallas (launch overhead wins)


def _cdiv(a, b):
    return (a + b - 1) // b


def _round_up(x, m):
    return ((x + m - 1) // m) * m


def _tpu_hint():
    """Returns (per-block VMEM budget in bytes, likely multi-TensorCore chip)."""
    try:
        info = pltpu.get_tpu_info()
        vmem = getattr(info, "vmem_capacity_bytes", 128 * 1024 * 1024)
        if vmem <= 64 * 1024 * 1024:
            # v7x-class: 64 MiB VMEM/TC, 2 TCs, ~3.2 TB/s HBM. Bigger blocks
            # amortize the ~0.35us/step overhead; 2x8 MiB double-buffered is
            # comfortably under the 32 MiB scoped-VMEM default.
            return 8 * 1024 * 1024, True
    except Exception:
        pass
    # v5e/v6e: 2x4 MiB double-buffered stays under v5e's 16 MiB scoped default.
    return 4 * 1024 * 1024, False


def _tile_plan(n_rows, width, itemsize, budget, multi_core):
    """Pick (tn, td, n_splits, nb_per_split, n_blocks); None -> fall back to jnp.

    Budgeting uses physical (lane-padded) bytes: round_up(td, 128) lanes, and
    tn a multiple of 128 (a multiple of every dtype's sublane pack: 8/16/32).
    """
    # ---- feature tile ----
    if width % _LANE == 0:
        # Largest 128-multiple so that a 128-row block fits the budget.
        td_cap = max(_LANE, (budget // (_LANE * itemsize)) // _LANE * _LANE)
        td = min(width, td_cap)
        while width % td:
            td -= _LANE
    else:
        td = width                        # block must span the full feature dim
    phys_row_bytes = _round_up(td, _LANE) * itemsize

    # ---- row tile ----
    if n_rows * phys_row_bytes <= budget:
        tn = n_rows                       # whole row range in one block
    else:
        tn = (budget // phys_row_bytes) // _LANE * _LANE
        if tn < _LANE:
            return None                   # untileable within budget (rare)
    n_blocks = _cdiv(n_rows, tn)

    # ---- row split for megacore (v7x); harmless serial loop on 1-TC chips.
    # Only accept a phantom (clamped, fully masked) block on multi-core chips.
    if n_blocks >= 2 and (n_blocks % 2 == 0 or multi_core):
        n_splits = 2
    else:
        n_splits = 1
    nb_per_split = _cdiv(n_blocks, n_splits)
    return tn, td, n_splits, nb_per_split, n_blocks


def _sum_kernel(x_ref, out_ref, *, n_rows, tn, nb_per_split, ragged):
    """out[si, 0, :] += column sums of the valid rows of this block."""

    @pl.when(pl.program_id(2) == 0)
    def _():
        out_ref[...] = jnp.zeros_like(out_ref)

    x = x_ref[...]
    if ragged:
        blk = pl.program_id(0) * nb_per_split + pl.program_id(2)
        rows_valid = n_rows - blk * tn          # <= 0 for a phantom block
        row_ids = lax.broadcasted_iota(jnp.int32, (tn, 1), 0)
        x = jnp.where(row_ids < rows_valid, x, jnp.zeros((), x.dtype))
    out_ref[...] += jnp.sum(x, axis=0, keepdims=True, dtype=jnp.float32)[None]


def _masked_sum_kernel(x_ref, m_ref, out_ref, *, n_rows, tn, nb_per_split, ragged):
    """out[si, 0, :] += m(1,tn) @ x(tn,td): mask-mult + row-reduce in one MXU op."""

    @pl.when(pl.program_id(2) == 0)
    def _():
        out_ref[...] = jnp.zeros_like(out_ref)

    x = x_ref[...]
    m = m_ref[...]
    if ragged:
        blk = pl.program_id(0) * nb_per_split + pl.program_id(2)
        rows_valid = n_rows - blk * tn
        row_ids = lax.broadcasted_iota(jnp.int32, (tn, 1), 0)
        lane_ids = lax.broadcasted_iota(jnp.int32, (1, tn), 1)
        x = jnp.where(row_ids < rows_valid, x, jnp.zeros((), x.dtype))
        m = jnp.where(lane_ids < rows_valid, m, 0.0)
    out_ref[...] += jnp.dot(
        m, x, precision=lax.Precision.HIGHEST,
        preferred_element_type=jnp.float32)[None]


def _partial_col_sums(seq, msk_row, plan):
    """Pallas column-sum reduction. Returns (n_splits, 1, D) float32 partials."""
    N, D = seq.shape
    tn, td, n_splits, nb_ps, n_blocks = plan
    itemsize = jnp.dtype(seq.dtype).itemsize
    ragged = (N % tn != 0) or (n_splits * nb_ps != n_blocks)
    grid = (n_splits, D // td, nb_ps)

    def x_map(si, di, ni):
        blk = jnp.minimum(si * nb_ps + ni, n_blocks - 1)   # clamp phantom block
        return (blk, di)

    def m_map(si, di, ni):
        blk = jnp.minimum(si * nb_ps + ni, n_blocks - 1)
        return (0, blk)

    def o_map(si, di, ni):
        return (si, 0, di)

    out_shape = jax.ShapeDtypeStruct((n_splits, 1, D), jnp.float32)
    out_spec = pl.BlockSpec((1, 1, td), o_map)
    cparams = pltpu.CompilerParams(
        dimension_semantics=("parallel", "parallel", "arbitrary"))

    if msk_row is None:
        kernel = functools.partial(_sum_kernel, n_rows=N, tn=tn,
                                   nb_per_split=nb_ps, ragged=ragged)
        cost = pl.CostEstimate(flops=N * D, transcendentals=0,
                               bytes_accessed=N * D * itemsize + n_splits * D * 4)
        return pl.pallas_call(
            kernel,
            out_shape=out_shape,
            grid=grid,
            in_specs=[pl.BlockSpec((tn, td), x_map)],
            out_specs=out_spec,
            compiler_params=cparams,
            cost_estimate=cost,
        )(seq)

    kernel = functools.partial(_masked_sum_kernel, n_rows=N, tn=tn,
                               nb_per_split=nb_ps, ragged=ragged)
    cost = pl.CostEstimate(flops=2 * N * D, transcendentals=0,
                           bytes_accessed=N * D * itemsize + N * 4 + n_splits * D * 4)
    return pl.pallas_call(
        kernel,
        out_shape=out_shape,
        grid=grid,
        in_specs=[pl.BlockSpec((tn, td), x_map),
                  pl.BlockSpec((1, tn), m_map)],
        out_specs=out_spec,
        compiler_params=cparams,
        cost_estimate=cost,
    )(seq, msk_row)


def avg_readout(seq, msk=None):
    """seq: (N, D). msk: optional (N,). Returns (D,) matching AvgReadout.forward."""
    N, D = seq.shape
    out_dtype = seq.dtype
    itemsize = jnp.dtype(seq.dtype).itemsize
    msk_f = None if msk is None else msk.astype(jnp.float32)

    budget, multi_core = _tpu_hint()
    plan = None
    if N * D * itemsize > _TINY_BYTES:
        plan = _tile_plan(N, D, itemsize, budget, multi_core)

    if plan is None:
        # Tiny input (grid launch/prologue overhead dominates) or an untileable
        # shape (huge D that is not a multiple of 128): XLA's fused reduction
        # is the right tool at these sizes.
        # TODO(synk): a dedicated path for huge non-128-multiple D could still
        # use Pallas with a lane-padded copy; not worth it here.
        if msk_f is None:
            return jnp.mean(seq.astype(jnp.float32), axis=0).astype(out_dtype)
        sums = jnp.sum(seq.astype(jnp.float32) * msk_f[:, None], axis=0)
        return (sums / jnp.sum(msk_f)).astype(out_dtype)

    if msk_f is None:
        part = _partial_col_sums(seq, None, plan)
        return (part.sum(axis=(0, 1)) / jnp.float32(N)).astype(out_dtype)

    part = _partial_col_sums(seq, msk_f.reshape(1, N), plan)
    # Normalizer is an O(N) scalar; division in the wrapper matches torch
    # semantics (including inf/NaN for an all-zero mask).
    return (part.sum(axis=(0, 1)) / jnp.sum(msk_f)).astype(out_dtype)


if __name__ == "__main__":
    key = jax.random.PRNGKey(0)

    shapes = [
        (8, 32),        # module's typical shape -> tiny-input bypass
        (1024, 128),    # single-block Pallas path
        (10000, 96),    # D not a multiple of 128, ragged tail, 2 row blocks
        (20000, 64),    # multi-step reduction with ragged last block
        (64, 16384),    # multiple feature tiles
    ]
    for N, D in shapes:
        key, k_seq, k_msk = jax.random.split(key, 3)
        seq = jax.random.normal(k_seq, (N, D), dtype=jnp.float32)
        msk = (jax.random.uniform(k_msk, (N,)) > 0.5).astype(jnp.float32)
        msk = msk.at[0].set(1.0)   # avoid all-zero mask (inf/NaN divide)

        # Branch 1: msk is None -> plain mean over axis 0.
        out_mean = jax.block_until_ready(avg_readout(seq))
        ref_mean = jnp.mean(seq, axis=0)
        assert out_mean.shape == (D,), (N, D, "mean shape")
        assert jnp.allclose(out_mean, ref_mean, atol=2e-4, rtol=2e-4), (N, D, "mean")

        # Branch 2: masked weighted mean.
        out_masked = jax.block_until_ready(avg_readout(seq, msk))
        ref_masked = jnp.sum(seq * msk[:, None], axis=0) / jnp.sum(msk)
        assert out_masked.shape == (D,), (N, D, "masked shape")
        assert jnp.allclose(out_masked, ref_masked, atol=2e-4, rtol=2e-4), (N, D, "masked")

    print("KERNEL_OK")
</pallas_src>

<mosaic_0001>
module attributes {stable_mosaic.version = 11 : i64} {
  func.func @_sum_kernel(%arg0: i32, %arg1: i32, %arg2: i32, %arg3: memref<1024x128xf32, #tpu.memory_space<vmem>>, %arg4: memref<1x1x128xf32, #tpu.memory_space<vmem>>) attributes {dimension_semantics = [#tpu.dimension_semantics<parallel>, #tpu.dimension_semantics<parallel>, #tpu.dimension_semantics<arbitrary>], iteration_bounds = array<i64: 1, 1, 1>, scalar_prefetch = 0 : i64, scratch_operands = 0 : i64, tpu.core_type = #tpu.core_type<tc>, window_params = [{transform_indices = @transform_0, window_bounds = array<i64: 1024, 128>}, {transform_indices = @transform_1, window_bounds = array<i64: 1, 1, 128>}]} {
    %c0_i32 = arith.constant 0 : i32
    %0 = arith.cmpi eq, %arg2, %c0_i32 : i32
    %1 = arith.extui %0 : i1 to i32
    %c0_i32_0 = arith.constant 0 : i32
    %2 = arith.cmpi ne, %1, %c0_i32_0 : i32
    scf.if %2 {
      %cst_8 = arith.constant 0.000000e+00 : f32
      %10 = vector.broadcast %cst_8 : f32 to vector<1x1x128xf32>
      %c0_9 = arith.constant 0 : index
      %c0_10 = arith.constant 0 : index
      %c0_11 = arith.constant 0 : index
      %11 = vector.load %arg4[%c0_9, %c0_10, %c0_11] : memref<1x1x128xf32, #tpu.memory_space<vmem>>, vector<1x1x128xf32>
      tpu.vector_store %arg4[%c0_9, %c0_10, %c0_11], %10 {strides = array<i32>} : memref<1x1x128xf32, #tpu.memory_space<vmem>>, vector<1x1x128xf32>,
    } else {
    }
    %c0 = arith.constant 0 : index
    %c0_1 = arith.constant 0 : index
    %3 = vector.load %arg3[%c0, %c0_1] : memref<1024x128xf32, #tpu.memory_space<vmem>>, vector<1024x128xf32>
    %c0_2 = arith.constant 0 : index
    %c0_3 = arith.constant 0 : index
    %c0_4 = arith.constant 0 : index
    %4 = vector.load %arg4[%c0_2, %c0_3, %c0_4] : memref<1x1x128xf32, #tpu.memory_space<vmem>>, vector<1x1x128xf32>
    %cst = arith.constant dense<0.000000e+00> : vector<128xf32>
    %5 = vector.multi_reduction <add>, %3, %cst [0] : vector<1024x128xf32> to vector<128xf32>
    %6 = vector.shape_cast %5 : vector<128xf32> to vector<1x128xf32>
    %7 = vector.shape_cast %6 : vector<1x128xf32> to vector<1x1x128xf32>
    %8 = arith.addf %4, %7 : vector<1x1x128xf32>
    %c0_5 = arith.constant 0 : index
    %c0_6 = arith.constant 0 : index
    %c0_7 = arith.constant 0 : index
    %9 = vector.load %arg4[%c0_5, %c0_6, %c0_7] : memref<1x1x128xf32, #tpu.memory_space<vmem>>, vector<1x1x128xf32>
    tpu.vector_store %arg4[%c0_5, %c0_6, %c0_7], %8 {strides = array<i32>} : memref<1x1x128xf32, #tpu.memory_space<vmem>>, vector<1x1x128xf32>,
    return
  }
  func.func @transform_0(%arg0: i32, %arg1: i32, %arg2: i32) -> (i32, i32) {
    %c1_i32 = arith.constant 1 : i32
    %0 = arith.muli %arg0, %c1_i32 : i32
    %1 = arith.addi %0, %arg2 : i32
    %c0_i32 = arith.constant 0 : i32
    %2 = arith.minsi %1, %c0_i32 : i32
    %c0_i32_0 = arith.constant 0 : i32
    return %2, %arg1 : i32, i32
  }
  func.func @transform_1(%arg0: i32, %arg1: i32, %arg2: i32) -> (i32, i32, i32) {
    %c0_i32 = arith.constant 0 : i32
    %c0_i32_0 = arith.constant 0 : i32
    return %arg0, %c0_i32, %arg1 : i32, i32, i32
  }
}

</mosaic_0001>

<llo_original>
// kernel: tpu_custom_call.1
$region0: #{tpu_custom_call.1}
  #allocation0 [shape = 'u32[]', space=smem, size = 0x4, offset = 0x4, fixed_abs, tag = 'smem constant byte address 0x4 - core index']
  #allocation1 [shape = 'u32[72,128]{1,0:T(1,128)}', space=vmem, size = 0x9000, scoped, tag = 'internal scratch']
  %s0 = inlined_call_operand.hbm [shape: f32[1024,128], index: 0, kind: input, shape index: {}]
  %s1 = inlined_call_operand.hbm [shape: f32[1,1,128], index: 1, kind: output, shape index: {}]
  %s2 = sld [smem:[#allocation0]]
  $region22: #{tpu_custom_call.1} parent=0
    _
  %s4 = ssub.s32 1, %s2
  %s5 = scalar_select 0, %s4, %s2
  $region1: #{tpu_custom_call.1} parent=0
    #allocation2 [shape = 'u8[524288]{0}', space=vmem, size = 0x80000, scoped, tag = 'input window, operand 0, single buffered']
    #allocation3 [shape = 's32[1]{0}', space=sflag, size = 0x4, scoped, tag = 'scoped memory for tpu_custom_call.1']
    #allocation4 [shape = 's32[1]{0}', space=sflag, size = 0x4, scoped, tag = 'scoped memory for tpu_custom_call.1']
    #allocation5 [shape = 'u8[512]{0}', space=vmem, size = 0x400, scoped, tag = 'output window, operand 0, single buffered']
    %6 = vsyncpa [#allocation3], 0
    %7 = vsyncpa [#allocation4], 0
    // Predicated region
    $region2: #{tpu_custom_call.1} parent=1 // pred_check
      _
    $region3: #{tpu_custom_call.1} parent=1 // pred_check_branch
      %9 = sbr.rel (0) target = $region5
    $region4: #{tpu_custom_call.1} parent=1 // pred_region
      %s10 = sadd.s32 0, 0
      %p11 = scmp.lt.s32.totalorder %s10, 0
      %s12 = scalar_select %p11, %s10, 0
      %s13 = smul.u32 128, %s12
      %15 = vsyncadd [#allocation3], 0
      %s16 = smul.addr %s13, 8
      %s17 = scalar_lea.hbm %s0, %s16
      %s18 = sshll.u32 %s17, 4
      %s19 = int_to_ptr.hbm [resolvable:$true] %s18
      %s20 = sshll.u32 [#allocation2], 4
      %s21 = int_to_ptr.vmem [resolvable:$true] %s20
      %26 = dma.hbm_to_vmem [thread:$0]  %s19, 16384, %s21, [#allocation3], 128, 128, 8
    $region5: #{tpu_custom_call.1} parent=1 // pred_fallthru
      _
    // Predicated region
    $region6: #{tpu_custom_call.1} parent=1 // pred_check
      _
    $region7: #{tpu_custom_call.1} parent=1 // pred_check_branch
      %28 = sbr.rel (0) target = $region9
    $region8: #{tpu_custom_call.1} parent=1 // pred_region
      %30 = dma.done [#allocation3], 16384
    $region9: #{tpu_custom_call.1} parent=1 // pred_fallthru
      _
    %s31 = sadd.s32 0, 0
    %p32 = scmp.lt.s32.totalorder %s31, 0
    %s33 = scalar_select %p32, %s31, 0
    %s34 = smul.u32 128, %s33
    %p35 = scmp.eq.s32.totalorder 0, 0
    // Predicated region
    $region10: #{tpu_custom_call.1} parent=1 // pred_check
      %p36 = pneg %p35
    $region11: #{tpu_custom_call.1} parent=1 // pred_check_branch
      %38 = sbr.rel (%p36) target = $region13
    $region12: #{tpu_custom_call.1} parent=1 // pred_region
      %39 = vst [vmem:[#allocation5] sm:$0x1] 0.0
    $region13: #{tpu_custom_call.1} parent=1 // pred_fallthru
      _
    %v40 = vld [vmem:[#allocation2] sm:$0xff]
    %v41 = vld [vmem:[#allocation2 + $0x8] sm:$0xff]
    %v42 = vld [vmem:[#allocation2 + $0x10] sm:$0xff]
    %v43 = vld [vmem:[#allocation2 + $0x18] sm:$0xff]
    %v44 = vld [vmem:[#allocation2 + $0x20] sm:$0xff]
    %v45 = vld [vmem:[#allocation2 + $0x28] sm:$0xff]
    %v46 = vld [vmem:[#allocation2 + $0x30] sm:$0xff]
    %v47 = vld [vmem:[#allocation2 + $0x38] sm:$0xff]
    %v48 = vld [vmem:[#allocation2 + $0x40] sm:$0xff]
    %v49 = vld [vmem:[#allocation2 + $0x48] sm:$0xff]
    %v50 = vld [vmem:[#allocation2 + $0x50] sm:$0xff]
    %v51 = vld [vmem:[#allocation2 + $0x58] sm:$0xff]
    %v52 = vld [vmem:[#allocation2 + $0x60] sm:$0xff]
    %v53 = vld [vmem:[#allocation2 + $0x68] sm:$0xff]
    %v54 = vld [vmem:[#allocation2 + $0x70] sm:$0xff]
    %v55 = vld [vmem:[#allocation2 + $0x78] sm:$0xff]
    %v56 = vld [vmem:[#allocation2 + $0x80] sm:$0xff]
    %v57 = vld [vmem:[#allocation2 + $0x88] sm:$0xff]
    %v58 = vld [vmem:[#allocation2 + $0x90] sm:$0xff]
    %v59 = vld [vmem:[#allocation2 + $0x98] sm:$0xff]
    %v60 = vld [vmem:[#allocation2 + $0xa0] sm:$0xff]
    %v61 = vld [vmem:[#allocation2 + $0xa8] sm:$0xff]
    %v62 = vld [vmem:[#allocation2 + $0xb0] sm:$0xff]
    %v63 = vld [vmem:[#allocation2 + $0xb8] sm:$0xff]
    %v64 = vld [vmem:[#allocation2 + $0xc0] sm:$0xff]
    %v65 = vld [vmem:[#allocation2 + $0xc8] sm:$0xff]
    %v66 = vld [vmem:[#allocation2 + $0xd0] sm:$0xff]
    %v67 = vld [vmem:[#allocation2 + $0xd8] sm:$0xff]
    %v68 = vld [vmem:[#allocation2 + $0xe0] sm:$0xff]
    %v69 = vld [vmem:[#allocation2 + $0xe8] sm:$0xff]
    %v70 = vld [vmem:[#allocation2 + $0xf0] sm:$0xff]
    %v71 = vld [vmem:[#allocation2 + $0xf8] sm:$0xff]
    %v72 = vld [vmem:[#allocation2 + $0x100] sm:$0xff]
    %v73 = vld [vmem:[#allocation2 + $0x108] sm:$0xff]
    %v74 = vld [vmem:[#allocation2 + $0x110] sm:$0xff]
    %v75 = vld [vmem:[#allocation2 + $0x118] sm:$0xff]
    %v76 = vld [vmem:[#allocation2 + $0x120] sm:$0xff]
    %v77 = vld [vmem:[#allocation2 + $0x128] sm:$0xff]
    %v78 = vld [vmem:[#allocation2 + $0x130] sm:$0xff]
    %v79 = vld [vmem:[#allocation2 + $0x138] sm:$0xff]
    %v80 = vld [vmem:[#allocation2 + $0x140] sm:$0xff]
    %v81 = vld [vmem:[#allocation2 + $0x148] sm:$0xff]
    %v82 = vld [vmem:[#allocation2 + $0x150] sm:$0xff]
    %v83 = vld [vmem:[#allocation2 + $0x158] sm:$0xff]
    %v84 = vld [vmem:[#allocation2 + $0x160] sm:$0xff]
    %v85 = vld [vmem:[#allocation2 + $0x168] sm:$0xff]
    %v86 = vld [vmem:[#allocation2 + $0x170] sm:$0xff]
    %v87 = vld [vmem:[#allocation2 + $0x178] sm:$0xff]
    %v88 = vld [vmem:[#allocation2 + $0x180] sm:$0xff]
    %v89 = vld [vmem:[#allocation2 + $0x188] sm:$0xff]
    %v90 = vld [vmem:[#allocation2 + $0x190] sm:$0xff]
    %v91 = vld [vmem:[#allocation2 + $0x198] sm:$0xff]
    %v92 = vld [vmem:[#allocation2 + $0x1a0] sm:$0xff]
    %v93 = vld [vmem:[#allocation2 + $0x1a8] sm:$0xff]
    %v94 = vld [vmem:[#allocation2 + $0x1b0] sm:$0xff]
    %v95 = vld [vmem:[#allocation2 + $0x1b8] sm:$0xff]
    %v96 = vld [vmem:[#allocation2 + $0x1c0] sm:$0xff]
    %v97 = vld [vmem:[#allocation2 + $0x1c8] sm:$0xff]
    %v98 = vld [vmem:[#allocation2 + $0x1d0] sm:$0xff]
    %v99 = vld [vmem:[#allocation2 + $0x1d8] sm:$0xff]
    %v100 = vld [vmem:[#allocation2 + $0x1e0] sm:$0xff]
    %v101 = vld [vmem:[#allocation2 + $0x1e8] sm:$0xff]
    %v102 = vld [vmem:[#allocation2 + $0x1f0] sm:$0xff]
    %v103 = vld [vmem:[#allocation2 + $0x1f8] sm:$0xff]
    %v104 = vld [vmem:[#allocation2 + $0x200] sm:$0xff]
    %v105 = vld [vmem:[#allocation2 + $0x208] sm:$0xff]
    %v106 = vld [vmem:[#allocation2 + $0x210] sm:$0xff]
    %v107 = vld [vmem:[#allocation2 + $0x218] sm:$0xff]
    %v108 = vld [vmem:[#allocation2 + $0x220] sm:$0xff]
    %v109 = vld [vmem:[#allocation2 + $0x228] sm:$0xff]
    %v110 = vld [vmem:[#allocation2 + $0x230] sm:$0xff]
    %v111 = vld [vmem:[#allocation2 + $0x238] sm:$0xff]
    %v112 = vld [vmem:[#allocation2 + $0x240] sm:$0xff]
    %v113 = vld [vmem:[#allocation2 + $0x248] sm:$0xff]
    %v114 = vld [vmem:[#allocation2 + $0x250] sm:$0xff]
    %v115 = vld [vmem:[#allocation2 + $0x258] sm:$0xff]
    %v116 = vld [vmem:[#allocation2 + $0x260] sm:$0xff]
    %v117 = vld [vmem:[#allocation2 + $0x268] sm:$0xff]
    %v118 = vld [vmem:[#allocation2 + $0x270] sm:$0xff]
    %v119 = vld [vmem:[#allocation2 + $0x278] sm:$0xff]
    %v120 = vld [vmem:[#allocation2 + $0x280] sm:$0xff]
    %v121 = vld [vmem:[#allocation2 + $0x288] sm:$0xff]
    %v122 = vld [vmem:[#allocation2 + $0x290] sm:$0xff]
    %v123 = vld [vmem:[#allocation2 + $0x298] sm:$0xff]
    %v124 = vld [vmem:[#allocation2 + $0x2a0] sm:$0xff]
    %v125 = vld [vmem:[#allocation2 + $0x2a8] sm:$0xff]
    %v126 = vld [vmem:[#allocation2 + $0x2b0] sm:$0xff]
    %v127 = vld [vmem:[#allocation2 + $0x2b8] sm:$0xff]
    %v128 = vld [vmem:[#allocation2 + $0x2c0] sm:$0xff]
    %v129 = vld [vmem:[#allocation2 + $0x2c8] sm:$0xff]
    %v130 = vld [vmem:[#allocation2 + $0x2d0] sm:$0xff]
    %v131 = vld [vmem:[#allocation2 + $0x2d8] sm:$0xff]
    %v132 = vld [vmem:[#allocation2 + $0x2e0] sm:$0xff]
    %v133 = vld [vmem:[#allocation2 + $0x2e8] sm:$0xff]
    %v134 = vld [vmem:[#allocation2 + $0x2f0] sm:$0xff]
    %v135 = vld [vmem:[#allocation2 + $0x2f8] sm:$0xff]
    %v136 = vld [vmem:[#allocation2 + $0x300] sm:$0xff]
    %v137 = vld [vmem:[#allocation2 + $0x308] sm:$0xff]
    %v138 = vld [vmem:[#allocation2 + $0x310] sm:$0xff]
    %v139 = vld [vmem:[#allocation2 + $0x318] sm:$0xff]
    %v140 = vld [vmem:[#allocation2 + $0x320] sm:$0xff]
    %v141 = vld [vmem:[#allocation2 + $0x328] sm:$0xff]
    %v142 = vld [vmem:[#allocation2 + $0x330] sm:$0xff]
    %v143 = vld [vmem:[#allocation2 + $0x338] sm:$0xff]
    %v144 = vld [vmem:[#allocation2 + $0x340] sm:$0xff]
    %v145 = vld [vmem:[#allocation2 + $0x348] sm:$0xff]
    %v146 = vld [vmem:[#allocation2 + $0x350] sm:$0xff]
    %v147 = vld [vmem:[#allocation2 + $0x358] sm:$0xff]
    %v148 = vld [vmem:[#allocation2 + $0x360] sm:$0xff]
    %v149 = vld [vmem:[#allocation2 + $0x368] sm:$0xff]
    %v150 = vld [vmem:[#allocation2 + $0x370] sm:$0xff]
    %v151 = vld [vmem:[#allocation2 + $0x378] sm:$0xff]
    %v152 = vld [vmem:[#allocation2 + $0x380] sm:$0xff]
    %v153 = vld [vmem:[#allocation2 + $0x388] sm:$0xff]
    %v154 = vld [vmem:[#allocation2 + $0x390] sm:$0xff]
    %v155 = vld [vmem:[#allocation2 + $0x398] sm:$0xff]
    %v156 = vld [vmem:[#allocation2 + $0x3a0] sm:$0xff]
    %v157 = vld [vmem:[#allocation2 + $0x3a8] sm:$0xff]
    %v158 = vld [vmem:[#allocation2 + $0x3b0] sm:$0xff]
    %v159 = vld [vmem:[#allocation2 + $0x3b8] sm:$0xff]
    %v160 = vld [vmem:[#allocation2 + $0x3c0] sm:$0xff]
    %v161 = vld [vmem:[#allocation2 + $0x3c8] sm:$0xff]
    %v162 = vld [vmem:[#allocation2 + $0x3d0] sm:$0xff]
    %v163 = vld [vmem:[#allocation2 + $0x3d8] sm:$0xff]
    %v164 = vld [vmem:[#allocation2 + $0x3e0] sm:$0xff]
    %v165 = vld [vmem:[#allocation2 + $0x3e8] sm:$0xff]
    %v166 = vld [vmem:[#allocation2 + $0x3f0] sm:$0xff]
    %v167 = vld [vmem:[#allocation2 + $0x3f8] sm:$0xff]
    %v168 = vld [vmem:[#allocation5] sm:$0x1]
    %v169 = vadd.f32 %v40, %v41
    %v170 = vadd.f32 %v169, %v42
    %v171 = vadd.f32 %v170, %v43
    %v172 = vadd.f32 %v171, %v44
    %v173 = vadd.f32 %v172, %v45
    %v174 = vadd.f32 %v173, %v46
    %v175 = vadd.f32 %v174, %v47
    %v176 = vadd.f32 %v175, %v48
    %v177 = vadd.f32 %v176, %v49
    %v178 = vadd.f32 %v177, %v50
    %v179 = vadd.f32 %v178, %v51
    %v180 = vadd.f32 %v179, %v52
    %v181 = vadd.f32 %v180, %v53
    %v182 = vadd.f32 %v181, %v54
    %v183 = vadd.f32 %v182, %v55
    %v184 = vadd.f32 %v183, %v56
    %v185 = vadd.f32 %v184, %v57
    %v186 = vadd.f32 %v185, %v58
    %v187 = vadd.f32 %v186, %v59
    %v188 = vadd.f32 %v187, %v60
    %v189 = vadd.f32 %v188, %v61
    %v190 = vadd.f32 %v189, %v62
    %v191 = vadd.f32 %v190, %v63
    %v192 = vadd.f32 %v191, %v64
    %v193 = vadd.f32 %v192, %v65
    %v194 = vadd.f32 %v193, %v66
    %v195 = vadd.f32 %v194, %v67
    %v196 = vadd.f32 %v195, %v68
    %v197 = vadd.f32 %v196, %v69
    %v198 = vadd.f32 %v197, %v70
    %v199 = vadd.f32 %v198, %v71
    %v200 = vadd.f32 %v199, %v72
    %v201 = vadd.f32 %v200, %v73
    %v202 = vadd.f32 %v201, %v74
    %v203 = vadd.f32 %v202, %v75
    %v204 = vadd.f32 %v203, %v76
    %v205 = vadd.f32 %v204, %v77
    %v206 = vadd.f32 %v205, %v78
    %v207 = vadd.f32 %v206, %v79
    %v208 = vadd.f32 %v207, %v80
    %v209 = vadd.f32 %v208, %v81
    %v210 = vadd.f32 %v209, %v82
    %v211 = vadd.f32 %v210, %v83
    %v212 = vadd.f32 %v211, %v84
    %v213 = vadd.f32 %v212, %v85
    %v214 = vadd.f32 %v213, %v86
    %v215 = vadd.f32 %v214, %v87
    %v216 = vadd.f32 %v215, %v88
    %v217 = vadd.f32 %v216, %v89
    %v218 = vadd.f32 %v217, %v90
    %v219 = vadd.f32 %v218, %v91
    %v220 = vadd.f32 %v219, %v92
    %v221 = vadd.f32 %v220, %v93
    %v222 = vadd.f32 %v221, %v94
    %v223 = vadd.f32 %v222, %v95
    %v224 = vadd.f32 %v223, %v96
    %v225 = vadd.f32 %v224, %v97
    %v226 = vadd.f32 %v225, %v98
    %v227 = vadd.f32 %v226, %v99
    %v228 = vadd.f32 %v227, %v100
    %v229 = vadd.f32 %v228, %v101
    %v230 = vadd.f32 %v229, %v102
    %v231 = vadd.f32 %v230, %v103
    %v232 = vadd.f32 %v231, %v104
    %v233 = vadd.f32 %v232, %v105
    %v234 = vadd.f32 %v233, %v106
    %v235 = vadd.f32 %v234, %v107
    %v236 = vadd.f32 %v235, %v108
    %v237 = vadd.f32 %v236, %v109
    %v238 = vadd.f32 %v237, %v110
    %v239 = vadd.f32 %v238, %v111
    %v240 = vadd.f32 %v239, %v112
    %v241 = vadd.f32 %v240, %v113
    %v242 = vadd.f32 %v241, %v114
    %v243 = vadd.f32 %v242, %v115
    %v244 = vadd.f32 %v243, %v116
    %v245 = vadd.f32 %v244, %v117
    %v246 = vadd.f32 %v245, %v118
    %v247 = vadd.f32 %v246, %v119
    %v248 = vadd.f32 %v247, %v120
    %v249 = vadd.f32 %v248, %v121
    %v250 = vadd.f32 %v249, %v122
    %v251 = vadd.f32 %v250, %v123
    %v252 = vadd.f32 %v251, %v124
    %v253 = vadd.f32 %v252, %v125
    %v254 = vadd.f32 %v253, %v126
    %v255 = vadd.f32 %v254, %v127
    %v256 = vadd.f32 %v255, %v128
    %v257 = vadd.f32 %v256, %v129
    %v258 = vadd.f32 %v257, %v130
    %v259 = vadd.f32 %v258, %v131
    %v260 = vadd.f32 %v259, %v132
    %v261 = vadd.f32 %v260, %v133
    %v262 = vadd.f32 %v261, %v134
    %v263 = vadd.f32 %v262, %v135
    %v264 = vadd.f32 %v263, %v136
    %v265 = vadd.f32 %v264, %v137
    %v266 = vadd.f32 %v265, %v138
    %v267 = vadd.f32 %v266, %v139
    %v268 = vadd.f32 %v267, %v140
    %v269 = vadd.f32 %v268, %v141
    %v270 = vadd.f32 %v269, %v142
    %v271 = vadd.f32 %v270, %v143
    %v272 = vadd.f32 %v271, %v144
    %v273 = vadd.f32 %v272, %v145
    %v274 = vadd.f32 %v273, %v146
    %v275 = vadd.f32 %v274, %v147
    %v276 = vadd.f32 %v275, %v148
    %v277 = vadd.f32 %v276, %v149
    %v278 = vadd.f32 %v277, %v150
    %v279 = vadd.f32 %v278, %v151
    %v280 = vadd.f32 %v279, %v152
    %v281 = vadd.f32 %v280, %v153
    %v282 = vadd.f32 %v281, %v154
    %v283 = vadd.f32 %v282, %v155
    %v284 = vadd.f32 %v283, %v156
    %v285 = vadd.f32 %v284, %v157
    %v286 = vadd.f32 %v285, %v158
    %v287 = vadd.f32 %v286, %v159
    %v288 = vadd.f32 %v287, %v160
    %v289 = vadd.f32 %v288, %v161
    %v290 = vadd.f32 %v289, %v162
    %v291 = vadd.f32 %v290, %v163
    %v292 = vadd.f32 %v291, %v164
    %v293 = vadd.f32 %v292, %v165
    %v294 = vadd.f32 %v293, %v166
    %v295 = vadd.f32 %v294, %v167
    %v296 = vrot.slane %v295, 4
    %v297 = vadd.f32 %v295, %v296
    %v298 = vrot.slane %v297, 2
    %v299 = vadd.f32 %v297, %v298
    %v300 = vrot.slane %v299, 1
    %v301 = vadd.f32 %v299, %v300
    %v302 = vadd.f32 %v168, %v301
    %303 = vst [vmem:[#allocation5] sm:$0x1] %v302
    // Predicated region
    $region14: #{tpu_custom_call.1} parent=1 // pred_check
      _
    $region15: #{tpu_custom_call.1} parent=1 // pred_check_branch
      %305 = sbr.rel (0) target = $region17
    $region16: #{tpu_custom_call.1} parent=1 // pred_region
      %307 = vsyncadd [#allocation4], 0
      %s309 = sshll.u32 [#allocation5], 4
      %s310 = int_to_ptr.vmem [resolvable:$true] %s309
      %s311 = sshll.u32 %s1, 4
      %s312 = int_to_ptr.hbm [resolvable:$true] %s311
      %314 = dma.vmem_to_hbm [thread:$0]  %s310, 16, %s312, [#allocation4]
    $region17: #{tpu_custom_call.1} parent=1 // pred_fallthru
      _
    // Predicated region
    $region18: #{tpu_custom_call.1} parent=1 // pred_check
      _
    $region19: #{tpu_custom_call.1} parent=1 // pred_check_branch
      %316 = sbr.rel (0) target = $region21
    $region20: #{tpu_custom_call.1} parent=1 // pred_region
      %318 = dma.done [#allocation4], 16
    $region21: #{tpu_custom_call.1} parent=1 // pred_fallthru
      _
    %319 = vsyncpa [#allocation3], 1
    %320 = vsyncpa [#allocation4], 1

</llo_original>
